<compile_context>
chip_gen: v5e
topology: v5e:2x2
jax: 0.10.0
libtpu: 0.0.40
codegen_flags: <defaults>
</compile_context>

<pallas_src>
import functools

import jax
import jax.numpy as jnp
from jax.experimental import pallas as pl
from jax.experimental.pallas import tpu as pltpu

LANE = 128            # lane width / minimum output-channel tile
TM_MAX = 1024         # max rows (N*H*W) per GEMM tile


def _round_up(x, m):
    return (x + m - 1) // m * m


def _tpu_vmem_limit_bytes():
    """Scoped-VMEM request derived from the actual chip (v7x only has 64 MiB)."""
    try:
        cap = int(pltpu.get_tpu_info().vmem_capacity_bytes)
    except Exception:
        cap = 64 * 1024 * 1024
    return max(16 * 1024 * 1024, min(cap // 2, 64 * 1024 * 1024))


def _mxu_n_tile():
    """Preferred N-tile: 256 for v6e/v7x (256x256 MXU), 128 for v5e and older."""
    try:
        kind = jax.devices()[0].device_kind.lower()
    except Exception:
        return LANE
    if any(v in kind for v in ("v2", "v3", "v4", "v5")):
        return LANE
    return 2 * LANE


# ----------------------------- Pallas kernels -------------------------------

def _gemm_bias_relu_kernel(x_ref, w_ref, b_ref, o_ref):
    """(tm,K)@(K,tn) + bias + ReLU.  BN scale already folded into w.

    x_ref may be f32 (lane-aligned inputs) or bf16 (wrapper-padded inputs);
    the cast to bf16 happens here so f32 activations are read from HBM once.
    """
    x = x_ref[...].astype(jnp.bfloat16)
    y = jnp.dot(x, w_ref[...], preferred_element_type=jnp.float32) + b_ref[...]
    o_ref[...] = jnp.maximum(y, 0.0).astype(o_ref.dtype)


def _conv3x3_c3_body(xp_ref, w2_ref, b2_ref, w3_ref, b3_ref, *, h, w):
    """Shared body: 3x3 conv (9 contiguous-slice taps) + BN + ReLU, then c3 GEMM + bias.

    xp_ref: (1, (h+3)*(w+2), K)  width/height padded, flattened c1 output (bf16)
    Returns the "wide"-layout (h*(w+2), cout_p) f32 pre-residual activation.
    Columns w, w+1 of every output row are junk and are dropped by the wrapper.
    """
    wp = w + 2
    rows = h * wp
    k = w2_ref.shape[1]
    acc = jnp.zeros((rows, k), jnp.float32)
    for tap in range(9):                          # unrolled: 9 MXU pushes
        dh, dw = divmod(tap, 3)
        xs = xp_ref[0, pl.ds(dh * wp + dw, rows), :]          # contiguous slice
        acc = acc + jnp.dot(xs, w2_ref[tap], preferred_element_type=jnp.float32)
    y2 = jnp.maximum(acc + b2_ref[...], 0.0).astype(jnp.bfloat16)
    return jnp.dot(y2, w3_ref[...], preferred_element_type=jnp.float32) + b3_ref[...]


def _fused_c2c3_ds_kernel(xp_ref, w2_ref, b2_ref, w3_ref, b3_ref,
                          xd_ref, wd_ref, bd_ref, o_ref, *, h, w):
    """c2 + c3 + downsample 1x1 conv + residual add + ReLU, all in one kernel."""
    y = _conv3x3_c3_body(xp_ref, w2_ref, b2_ref, w3_ref, b3_ref, h=h, w=w)
    y = y + jnp.dot(xd_ref[0].astype(jnp.bfloat16), wd_ref[...],
                    preferred_element_type=jnp.float32) + bd_ref[...]
    o_ref[0] = jnp.maximum(y, 0.0).astype(o_ref.dtype)


def _fused_c2c3_res_kernel(xp_ref, w2_ref, b2_ref, w3_ref, b3_ref,
                           r_ref, o_ref, *, h, w):
    """c2 + c3 + identity residual add + ReLU (no downsample branch)."""
    y = _conv3x3_c3_body(xp_ref, w2_ref, b2_ref, w3_ref, b3_ref, h=h, w=w)
    y = y + r_ref[0].astype(jnp.float32)
    o_ref[0] = jnp.maximum(y, 0.0).astype(o_ref.dtype)


# --------------------------- pallas_call wrappers ----------------------------

def _gemm_bias_relu(x2d, w2d, bias, *, tm, tn, vmem_limit):
    mp, k = x2d.shape
    np_ = w2d.shape[1]
    return pl.pallas_call(
        _gemm_bias_relu_kernel,
        out_shape=jax.ShapeDtypeStruct((mp, np_), jnp.bfloat16),
        grid_spec=pltpu.PrefetchScalarGridSpec(
            num_scalar_prefetch=0,
            grid=(mp // tm, np_ // tn),
            in_specs=[
                pl.BlockSpec((tm, k), lambda i, j: (i, 0)),
                pl.BlockSpec((k, tn), lambda i, j: (0, j)),
                pl.BlockSpec((1, tn), lambda i, j: (0, j)),
            ],
            out_specs=pl.BlockSpec((tm, tn), lambda i, j: (i, j)),
        ),
        compiler_params=pltpu.CompilerParams(
            dimension_semantics=("parallel", "parallel"),
            vmem_limit_bytes=vmem_limit,
        ),
    )(x2d, w2d, bias)


def _fused_c2_c3(xp, w2, b2, w3, b3, res_args, *, h, w, has_downsample, vmem_limit):
    n, pf, d4_p = xp.shape
    cout_p = w3.shape[1]
    wp = w + 2
    rows = h * wp
    in_specs = [
        pl.BlockSpec((1, pf, d4_p), lambda b: (b, 0, 0)),
        pl.BlockSpec((9, d4_p, d4_p), lambda b: (0, 0, 0)),   # w2: fully resident
        pl.BlockSpec((1, d4_p), lambda b: (0, 0)),
        pl.BlockSpec((d4_p, cout_p), lambda b: (0, 0)),       # w3: fully resident
        pl.BlockSpec((1, cout_p), lambda b: (0, 0)),
    ]
    if has_downsample:
        xd, wd, bd = res_args
        cin_p = xd.shape[-1]
        kernel = functools.partial(_fused_c2c3_ds_kernel, h=h, w=w)
        in_specs += [
            pl.BlockSpec((1, rows, cin_p), lambda b: (b, 0, 0)),
            pl.BlockSpec((cin_p, cout_p), lambda b: (0, 0)),   # wd: fully resident
            pl.BlockSpec((1, cout_p), lambda b: (0, 0)),
        ]
        args = (xp, w2, b2, w3, b3, xd, wd, bd)
    else:
        (res,) = res_args
        kernel = functools.partial(_fused_c2c3_res_kernel, h=h, w=w)
        in_specs += [pl.BlockSpec((1, rows, cout_p), lambda b: (b, 0, 0))]
        args = (xp, w2, b2, w3, b3, res)
    return pl.pallas_call(
        kernel,
        out_shape=jax.ShapeDtypeStruct((n, rows, cout_p), jnp.float32),
        grid_spec=pltpu.PrefetchScalarGridSpec(
            num_scalar_prefetch=0,
            grid=(n,),
            in_specs=in_specs,
            out_specs=pl.BlockSpec((1, rows, cout_p), lambda b: (b, 0, 0)),
        ),
        compiler_params=pltpu.CompilerParams(
            dimension_semantics=("parallel",),
            vmem_limit_bytes=vmem_limit,
        ),
    )(*args)


# ------------------------------ parameter prep -------------------------------

def _fold_bn(gamma, beta, mean, var, eps=1e-5):
    scale = gamma / jnp.sqrt(var + eps)
    return scale, beta - mean * scale


def _init_conv_weight(key, cout, cin, ksz):
    fan_in = cin * ksz * ksz
    bound = 1.0 / (fan_in ** 0.5)
    return jax.random.uniform(key, (cout, cin, ksz, ksz), jnp.float32, -bound, bound)


def _init_bn(key, c):
    k1, k2, k3, k4 = jax.random.split(key, 4)
    gamma = jax.random.uniform(k1, (c,), jnp.float32, 0.5, 1.5)
    beta = jax.random.uniform(k2, (c,), jnp.float32, -0.1, 0.1)
    mean = jax.random.uniform(k3, (c,), jnp.float32, -0.1, 0.1)
    var = jax.random.uniform(k4, (c,), jnp.float32, 0.5, 1.5)
    return _fold_bn(gamma, beta, mean, var)


def init_bottleneck_params(key, in_channels, out_channels):
    d4 = out_channels // 4
    ks = jax.random.split(key, 8)
    params = {}
    params["w1"] = _init_conv_weight(ks[0], d4, in_channels, 1)
    params["s1"], params["b1"] = _init_bn(ks[1], d4)
    params["w2"] = _init_conv_weight(ks[2], d4, d4, 3)
    params["s2"], params["b2"] = _init_bn(ks[3], d4)
    params["w3"] = _init_conv_weight(ks[4], out_channels, d4, 1)
    params["s3"], params["b3"] = _init_bn(ks[5], out_channels)
    if in_channels != out_channels:
        params["wd"] = _init_conv_weight(ks[6], out_channels, in_channels, 1)
        params["sd"], params["bd"] = _init_bn(ks[7], out_channels)
    else:
        params["wd"] = None
    return params


def _prepare_params(params, cin_p, d4_p, cout_p):
    """Fold BN scale into weights, pad channels to lane multiples, cast bf16."""
    d4 = params["w1"].shape[0]

    def fold_1x1(w, scale, bias, kp, np_p):
        co, ci = w.shape[0], w.shape[1]
        w2d = w.reshape(co, ci).T * scale[None, :]                    # (ci, co)
        w2d = jnp.pad(w2d, ((0, kp - ci), (0, np_p - co))).astype(jnp.bfloat16)
        b = jnp.pad(bias, (0, np_p - co)).reshape(1, np_p).astype(jnp.float32)
        return w2d, b

    prep = {}
    prep["w1"], prep["b1"] = fold_1x1(params["w1"], params["s1"], params["b1"], cin_p, d4_p)
    prep["w3"], prep["b3"] = fold_1x1(params["w3"], params["s3"], params["b3"], d4_p, cout_p)

    # 3x3 weight -> (9 taps, Cin, Cout) with BN scale folded on Cout.
    w2 = jnp.transpose(params["w2"], (2, 3, 1, 0)).reshape(9, d4, d4)
    w2 = w2 * params["s2"][None, None, :]
    prep["w2"] = jnp.pad(w2, ((0, 0), (0, d4_p - d4), (0, d4_p - d4))).astype(jnp.bfloat16)
    prep["b2"] = jnp.pad(params["b2"], (0, d4_p - d4)).reshape(1, d4_p).astype(jnp.float32)

    if params.get("wd") is not None:
        prep["wd"], prep["bd"] = fold_1x1(params["wd"], params["sd"], params["bd"], cin_p, cout_p)
    return prep


# -------------------------------- forward pass --------------------------------

def bottleneck_forward(x_nchw, params, is_downsample):
    """Forward pass of the PyTorch Bottleneck (eval-mode BN). NCHW f32 in/out."""
    x = jnp.transpose(x_nchw, (0, 2, 3, 1)).astype(jnp.float32)        # NHWC
    n, _, _, cin = x.shape
    d4 = params["w1"].shape[0]
    cout = params["w3"].shape[0]
    has_downsample = params.get("wd") is not None
    # The PyTorch module is only shape-consistent when the stride-2 main path
    # and the stride-2 downsample branch are both present or both absent.
    assert is_downsample == has_downsample == (cin != cout), (
        "Bottleneck requires is_downsample == (in_channels != out_channels)")
    s1 = 2 if is_downsample else 1

    cin_p = _round_up(cin, LANE)
    d4_p = _round_up(d4, LANE)
    cout_p = _round_up(cout, LANE)
    prep = _prepare_params(params, cin_p, d4_p, cout_p)

    vmem_limit = _tpu_vmem_limit_bytes()
    tn_pref = _mxu_n_tile()

    # ---- c1: 1x1 conv (stride s1) + BN + ReLU as a tiled GEMM ---------------
    x1 = x[:, ::s1, ::s1, :] if s1 > 1 else x
    h1, w1 = x1.shape[1], x1.shape[2]
    m = n * h1 * w1
    x1_flat = x1.reshape(m, cin)
    if cin_p != cin:
        # Channel pad is unavoidable -> cast to bf16 here (halves the padded copy).
        x1_pc = jnp.pad(x1_flat, ((0, 0), (0, cin_p - cin))).astype(jnp.bfloat16)
    else:
        # Already lane-aligned: pass f32, the kernel casts to bf16 in-VMEM.
        x1_pc = x1_flat

    tm = min(TM_MAX, _round_up(m, 8))            # tm capped at m -> <=7 waste rows
    mp = _round_up(m, tm)
    x1_gemm = x1_pc if mp == m else jnp.pad(x1_pc, ((0, mp - m), (0, 0)))
    tn1 = tn_pref if d4_p % tn_pref == 0 else LANE
    y1 = _gemm_bias_relu(x1_gemm, prep["w1"], prep["b1"],
                         tm=tm, tn=tn1, vmem_limit=vmem_limit)

    # ---- fused c2 (3x3) + c3 (1x1) + residual/downsample + ReLU -------------
    # Pad height by (1,2) (the extra zero row makes every 3x3 tap a contiguous
    # slice of the flattened buffer) and width by (1,1); flatten spatially.
    y1 = y1[:m].reshape(n, h1, w1, d4_p)
    wp = w1 + 2
    xp = jnp.pad(y1, ((0, 0), (1, 2), (1, 1), (0, 0))).reshape(n, (h1 + 3) * wp, d4_p)

    if has_downsample:
        # Reuse the channel-padded stride-2 slice that already fed c1.
        xd = x1_pc.reshape(n, h1, w1, cin_p)
        xd = jnp.pad(xd, ((0, 0), (0, 0), (0, 2), (0, 0))).reshape(n, h1 * wp, cin_p)
        out_wide = _fused_c2_c3(xp, prep["w2"], prep["b2"], prep["w3"], prep["b3"],
                                (xd, prep["wd"], prep["bd"]),
                                h=h1, w=w1, has_downsample=True, vmem_limit=vmem_limit)
    else:
        # Identity residual (cin == cout); pad to the wide layout + lane width.
        res = jnp.pad(x, ((0, 0), (0, 0), (0, 2), (0, cout_p - cin)))
        res = res.reshape(n, h1 * wp, cout_p)
        out_wide = _fused_c2_c3(xp, prep["w2"], prep["b2"], prep["w3"], prep["b3"],
                                (res,),
                                h=h1, w=w1, has_downsample=False, vmem_limit=vmem_limit)

    # Drop the 2 junk columns per row (wide layout) and the channel padding.
    out = out_wide.reshape(n, h1, wp, cout_p)[:, :, :w1, :cout]
    return jnp.transpose(out, (0, 3, 1, 2))                            # NCHW


# ----------------------------------- main -------------------------------------

if __name__ == "__main__":
    key = jax.random.PRNGKey(0)
    k1, k2, k3, k4, k5, k6 = jax.random.split(key, 6)

    # Case A: channel expansion + stride-2 downsample branch (4 -> 8).
    xa = jax.random.normal(k1, (2, 4, 16, 16), dtype=jnp.float32)
    pa = init_bottleneck_params(k2, 4, 8)
    oa = jax.block_until_ready(bottleneck_forward(xa, pa, is_downsample=True))
    assert oa.shape == (2, 8, 8, 8), oa.shape
    assert bool(jnp.all(oa >= 0.0)) and bool(jnp.all(jnp.isfinite(oa)))

    # Case B: identity residual path (8 -> 8, stride 1).
    xb = jax.random.normal(k3, (2, 8, 16, 16), dtype=jnp.float32)
    pb = init_bottleneck_params(k4, 8, 8)
    ob = jax.block_until_ready(bottleneck_forward(xb, pb, is_downsample=False))
    assert ob.shape == (2, 8, 16, 16), ob.shape
    assert bool(jnp.all(ob >= 0.0)) and bool(jnp.all(jnp.isfinite(ob)))

    # Case C: lane-aligned input channels (exercises f32-in + in-kernel bf16 cast).
    xc = jax.random.normal(k5, (2, 128, 16, 16), dtype=jnp.float32)
    pc = init_bottleneck_params(k6, 128, 256)
    oc = jax.block_until_ready(bottleneck_forward(xc, pc, is_downsample=True))
    assert oc.shape == (2, 256, 8, 8), oc.shape
    assert bool(jnp.all(oc >= 0.0)) and bool(jnp.all(jnp.isfinite(oc)))

    print("KERNEL_OK")
</pallas_src>

<mosaic_0001>
module attributes {stable_mosaic.version = 11 : i64} {
  func.func @_gemm_bias_relu_kernel(%arg0: i32, %arg1: i32, %arg2: memref<128x128xbf16, #tpu.memory_space<vmem>>, %arg3: memref<128x128xbf16, #tpu.memory_space<vmem>>, %arg4: memref<1x128xf32, #tpu.memory_space<vmem>>, %arg5: memref<128x128xbf16, #tpu.memory_space<vmem>>) attributes {dimension_semantics = [#tpu.dimension_semantics<parallel>, #tpu.dimension_semantics<parallel>], iteration_bounds = array<i64: 1, 1>, scalar_prefetch = 0 : i64, scratch_operands = 0 : i64, tpu.core_type = #tpu.core_type<tc>, window_params = [{transform_indices = @transform_0, window_bounds = array<i64: 128, 128>}, {transform_indices = @transform_1, window_bounds = array<i64: 128, 128>}, {transform_indices = @transform_2, window_bounds = array<i64: 1, 128>}, {transform_indices = @transform_3, window_bounds = array<i64: 128, 128>}]} {
    %c0 = arith.constant 0 : index
    %c0_0 = arith.constant 0 : index
    %0 = vector.load %arg2[%c0, %c0_0] : memref<128x128xbf16, #tpu.memory_space<vmem>>, vector<128x128xbf16>
    %c0_1 = arith.constant 0 : index
    %c0_2 = arith.constant 0 : index
    %1 = vector.load %arg3[%c0_1, %c0_2] : memref<128x128xbf16, #tpu.memory_space<vmem>>, vector<128x128xbf16>
    %cst = arith.constant dense<0.000000e+00> : vector<128x128xf32>
    %2 = tpu.matmul %0, %1, %cst {dimension_numbers = #tpu.dot_dimension_numbers<[1], [0], [0], [1], [0, 0, 1, 1], [], []>} : vector<128x128xbf16>, vector<128x128xbf16>, vector<128x128xf32> -> vector<128x128xf32>
    %c0_3 = arith.constant 0 : index
    %c0_4 = arith.constant 0 : index
    %3 = vector.load %arg4[%c0_3, %c0_4] : memref<1x128xf32, #tpu.memory_space<vmem>>, vector<1x128xf32>
    %4 = vector.broadcast %3 : vector<1x128xf32> to vector<128x128xf32>
    %5 = arith.addf %2, %4 : vector<128x128xf32>
    %cst_5 = arith.constant 0.000000e+00 : f32
    %6 = vector.broadcast %cst_5 : f32 to vector<128x128xf32>
    %7 = arith.maximumf %5, %6 : vector<128x128xf32>
    %8 = arith.truncf %7 : vector<128x128xf32> to vector<128x128xbf16>
    %c0_6 = arith.constant 0 : index
    %c0_7 = arith.constant 0 : index
    %9 = vector.load %arg5[%c0_6, %c0_7] : memref<128x128xbf16, #tpu.memory_space<vmem>>, vector<128x128xbf16>
    tpu.vector_store %arg5[%c0_6, %c0_7], %8 {strides = array<i32>} : memref<128x128xbf16, #tpu.memory_space<vmem>>, vector<128x128xbf16>,
    return
  }
  func.func @transform_0(%arg0: i32, %arg1: i32) -> (i32, i32) {
    %c0_i32 = arith.constant 0 : i32
    %c0_i32_0 = arith.constant 0 : i32
    return %arg0, %c0_i32 : i32, i32
  }
  func.func @transform_1(%arg0: i32, %arg1: i32) -> (i32, i32) {
    %c0_i32 = arith.constant 0 : i32
    %c0_i32_0 = arith.constant 0 : i32
    return %c0_i32, %arg1 : i32, i32
  }
  func.func @transform_2(%arg0: i32, %arg1: i32) -> (i32, i32) {
    %c0_i32 = arith.constant 0 : i32
    %c0_i32_0 = arith.constant 0 : i32
    return %c0_i32, %arg1 : i32, i32
  }
  func.func @transform_3(%arg0: i32, %arg1: i32) -> (i32, i32) {
    %c0_i32 = arith.constant 0 : i32
    return %arg0, %arg1 : i32, i32
  }
}

</mosaic_0001>

<llo_original>
// kernel: tpu_custom_call.1
$region0: #{tpu_custom_call.1}
  #allocation0 [shape = 'u32[]', space=smem, size = 0x4, offset = 0x4, fixed_abs, tag = 'smem constant byte address 0x4 - core index']
  #allocation1 [shape = 'u32[72,128]{1,0:T(1,128)}', space=vmem, size = 0x9000, scoped, tag = 'internal scratch']
  %s0 = inlined_call_operand.hbm [shape: bf16[128,128], index: 0, kind: input, shape index: {}]
  %s1 = inlined_call_operand.hbm [shape: bf16[128,128], index: 1, kind: input, shape index: {}]
  %s2 = inlined_call_operand.vmem [shape: f32[1,128], index: 2, kind: input, shape index: {}]
  %s3 = inlined_call_operand.hbm [shape: bf16[128,128], index: 3, kind: output, shape index: {}]
  %s4 = sld [smem:[#allocation0]]
  $region30: #{tpu_custom_call.1} parent=0
    _
  %s6 = ssub.s32 1, %s4
  %s7 = scalar_select 0, %s6, %s4
  $region1: #{tpu_custom_call.1} parent=0
    #allocation2 [shape = 'u8[32768]{0}', space=vmem, size = 0x8000, scoped, tag = 'input window, operand 0, single buffered']
    #allocation3 [shape = 's32[1]{0}', space=sflag, size = 0x4, scoped, tag = 'scoped memory for tpu_custom_call.1']
    #allocation4 [shape = 's32[1]{0}', space=sflag, size = 0x4, scoped, tag = 'scoped memory for tpu_custom_call.1']
    #allocation5 [shape = 'u8[32768]{0}', space=vmem, size = 0x8000, scoped, tag = 'input window, operand 1, single buffered']
    #allocation6 [shape = 's32[1]{0}', space=sflag, size = 0x4, scoped, tag = 'scoped memory for tpu_custom_call.1']
    #allocation7 [shape = 'u8[32768]{0}', space=vmem, size = 0x8000, scoped, tag = 'output window, operand 0, single buffered']
    %8 = vsyncpa [#allocation3], 0
    %9 = vsyncpa [#allocation6], 0
    %10 = vsyncpa [#allocation4], 0
    // Predicated region
    $region2: #{tpu_custom_call.1} parent=1 // pred_check
      _
    $region3: #{tpu_custom_call.1} parent=1 // pred_check_branch
      %12 = sbr.rel (0) target = $region5
    $region4: #{tpu_custom_call.1} parent=1 // pred_region
      %14 = vsyncadd [#allocation3], 0
      %s15 = sshll.u32 %s0, 4
      %s16 = int_to_ptr.hbm [resolvable:$true] %s15
      %s17 = sshll.u32 [#allocation2], 4
      %s18 = int_to_ptr.vmem [resolvable:$true] %s17
      %23 = dma.hbm_to_vmem [thread:$0]  %s16, 1024, %s18, [#allocation3], 64, 64, 4
    $region5: #{tpu_custom_call.1} parent=1 // pred_fallthru
      _
    // Predicated region
    $region6: #{tpu_custom_call.1} parent=1 // pred_check
      _
    $region7: #{tpu_custom_call.1} parent=1 // pred_check_branch
      %25 = sbr.rel (0) target = $region9
    $region8: #{tpu_custom_call.1} parent=1 // pred_region
      %27 = vsyncadd [#allocation6], 0
      %s28 = sshll.u32 %s1, 4
      %s29 = int_to_ptr.hbm [resolvable:$true] %s28
      %s30 = sshll.u32 [#allocation5], 4
      %s31 = int_to_ptr.vmem [resolvable:$true] %s30
      %36 = dma.hbm_to_vmem [thread:$0]  %s29, 1024, %s31, [#allocation6], 64, 64, 4
    $region9: #{tpu_custom_call.1} parent=1 // pred_fallthru
      _
    // Predicated region
    $region10: #{tpu_custom_call.1} parent=1 // pred_check
      _
    $region11: #{tpu_custom_call.1} parent=1 // pred_check_branch
      %38 = sbr.rel (0) target = $region13
    $region12: #{tpu_custom_call.1} parent=1 // pred_region
      _
    $region13: #{tpu_custom_call.1} parent=1 // pred_fallthru
      _
    // Predicated region
    $region14: #{tpu_custom_call.1} parent=1 // pred_check
      _
    $region15: #{tpu_custom_call.1} parent=1 // pred_check_branch
      %40 = sbr.rel (0) target = $region17
    $region16: #{tpu_custom_call.1} parent=1 // pred_region
      %42 = dma.done [#allocation3], 1024
    $region17: #{tpu_custom_call.1} parent=1 // pred_fallthru
      _
    // Predicated region
    $region18: #{tpu_custom_call.1} parent=1 // pred_check
      _
    $region19: #{tpu_custom_call.1} parent=1 // pred_check_branch
      %44 = sbr.rel (0) target = $region21
    $region20: #{tpu_custom_call.1} parent=1 // pred_region
      %46 = dma.done [#allocation6], 1024
    $region21: #{tpu_custom_call.1} parent=1 // pred_fallthru
      _
    %v47 = vld [vmem:[#allocation2] sm:$0xf]
    %v48 = vld [vmem:[#allocation2 + $0x4] sm:$0xf]
    %v49 = vld [vmem:[#allocation2 + $0x8] sm:$0xf]
    %v50 = vld [vmem:[#allocation2 + $0xc] sm:$0xf]
    %v51 = vld [vmem:[#allocation2 + $0x10] sm:$0xf]
    %v52 = vld [vmem:[#allocation2 + $0x14] sm:$0xf]
    %v53 = vld [vmem:[#allocation2 + $0x18] sm:$0xf]
    %v54 = vld [vmem:[#allocation2 + $0x1c] sm:$0xf]
    %v55 = vld [vmem:[#allocation2 + $0x20] sm:$0xf]
    %v56 = vld [vmem:[#allocation2 + $0x24] sm:$0xf]
    %v57 = vld [vmem:[#allocation2 + $0x28] sm:$0xf]
    %v58 = vld [vmem:[#allocation2 + $0x2c] sm:$0xf]
    %v59 = vld [vmem:[#allocation2 + $0x30] sm:$0xf]
    %v60 = vld [vmem:[#allocation2 + $0x34] sm:$0xf]
    %v61 = vld [vmem:[#allocation2 + $0x38] sm:$0xf]
    %v62 = vld [vmem:[#allocation2 + $0x3c] sm:$0xf]
    %v63 = vld [vmem:[#allocation5] sm:$0xf]
    %v64 = vld [vmem:[#allocation5 + $0x4] sm:$0xf]
    %v65 = vld [vmem:[#allocation5 + $0x8] sm:$0xf]
    %v66 = vld [vmem:[#allocation5 + $0xc] sm:$0xf]
    %v67 = vld [vmem:[#allocation5 + $0x10] sm:$0xf]
    %v68 = vld [vmem:[#allocation5 + $0x14] sm:$0xf]
    %v69 = vld [vmem:[#allocation5 + $0x18] sm:$0xf]
    %v70 = vld [vmem:[#allocation5 + $0x1c] sm:$0xf]
    %v71 = vld [vmem:[#allocation5 + $0x20] sm:$0xf]
    %v72 = vld [vmem:[#allocation5 + $0x24] sm:$0xf]
    %v73 = vld [vmem:[#allocation5 + $0x28] sm:$0xf]
    %v74 = vld [vmem:[#allocation5 + $0x2c] sm:$0xf]
    %v75 = vld [vmem:[#allocation5 + $0x30] sm:$0xf]
    %v76 = vld [vmem:[#allocation5 + $0x34] sm:$0xf]
    %v77 = vld [vmem:[#allocation5 + $0x38] sm:$0xf]
    %v78 = vld [vmem:[#allocation5 + $0x3c] sm:$0xf]
    %v79 = vld [vmem:[%s2] sm:$0x1]
    %v81 = vperm.slane %v79, 0
    %v99 = vunpack.c.l.b16 %v47
    %v100 = vunpack.c.l.b16 %v48
    %v101 = vunpack.c.l.b16 %v49
    %v102 = vunpack.c.l.b16 %v50
    %v103 = vunpack.c.l.b16 %v51
    %v104 = vunpack.c.l.b16 %v52
    %v105 = vunpack.c.l.b16 %v53
    %v106 = vunpack.c.l.b16 %v54
    %v107 = vunpack.c.l.b16 %v55
    %v108 = vunpack.c.l.b16 %v56
    %v109 = vunpack.c.l.b16 %v57
    %v110 = vunpack.c.l.b16 %v58
    %v111 = vunpack.c.l.b16 %v59
    %v112 = vunpack.c.l.b16 %v60
    %v113 = vunpack.c.l.b16 %v61
    %v114 = vunpack.c.l.b16 %v62
    %v115 = vpack.c.b16 %v100, %v99
    %v116 = vpack.c.b16 %v102, %v101
    %v117 = vpack.c.b16 %v104, %v103
    %v118 = vpack.c.b16 %v106, %v105
    %v119 = vpack.c.b16 %v108, %v107
    %v120 = vpack.c.b16 %v110, %v109
    %v121 = vpack.c.b16 %v112, %v111
    %v122 = vpack.c.b16 %v114, %v113
    %v147 = vunpack.c.l.b16 %v63
    %v148 = vunpack.c.l.b16 %v64
    %v149 = vunpack.c.l.b16 %v65
    %v150 = vunpack.c.l.b16 %v66
    %v151 = vunpack.c.l.b16 %v67
    %v152 = vunpack.c.l.b16 %v68
    %v153 = vunpack.c.l.b16 %v69
    %v154 = vunpack.c.l.b16 %v70
    %v155 = vunpack.c.l.b16 %v71
    %v156 = vunpack.c.l.b16 %v72
    %v157 = vunpack.c.l.b16 %v73
    %v158 = vunpack.c.l.b16 %v74
    %v159 = vunpack.c.l.b16 %v75
    %v160 = vunpack.c.l.b16 %v76
    %v161 = vunpack.c.l.b16 %v77
    %v162 = vunpack.c.l.b16 %v78
    %v163 = vpack.c.b16 %v148, %v147
    %v164 = vpack.c.b16 %v150, %v149
    %v165 = vpack.c.b16 %v152, %v151
    %v166 = vpack.c.b16 %v154, %v153
    %v167 = vpack.c.b16 %v156, %v155
    %v168 = vpack.c.b16 %v158, %v157
    %v169 = vpack.c.b16 %v160, %v159
    %v170 = vpack.c.b16 %v162, %v161
    %179 = vmatpush.bf16.msra.mxu0 %v170
    %180 = vmatpush.bf16.msra.mxu0 %v169
    %181 = vmatpush.bf16.msra.mxu0 %v168
    %182 = vmatpush.bf16.msra.mxu0 %v167
    %183 = vmatpush.bf16.msra.mxu0 %v166
    %184 = vmatpush.bf16.msra.mxu0 %v165
    %185 = vmatpush.bf16.msra.mxu0 %v164
    %186 = vmatpush.bf16.msra.mxu0 %v163
    %187 = vmatmul.bf16.gmra.mxu0 %v115
    %v188 = vpop.f32.mrf.mxu0
    %v189 = vadd.f32 %v81, %v188
    %v190 = vpop.f32.mrf.mxu0
    %v191 = vadd.f32 %v81, %v190
    %192 = vmatmul.bf16.gmra.mxu0 %v116
    %v193 = vpop.f32.mrf.mxu0
    %v194 = vadd.f32 %v81, %v193
    %v195 = vpop.f32.mrf.mxu0
    %v196 = vadd.f32 %v81, %v195
    %197 = vmatmul.bf16.gmra.mxu0 %v117
    %v198 = vpop.f32.mrf.mxu0
    %v199 = vadd.f32 %v81, %v198
    %v200 = vpop.f32.mrf.mxu0
    %v201 = vadd.f32 %v81, %v200
    %202 = vmatmul.bf16.gmra.mxu0 %v118
    %v203 = vpop.f32.mrf.mxu0
    %v204 = vadd.f32 %v81, %v203
    %v205 = vpop.f32.mrf.mxu0
    %v206 = vadd.f32 %v81, %v205
    %207 = vmatmul.bf16.gmra.mxu0 %v119
    %v208 = vpop.f32.mrf.mxu0
    %v209 = vadd.f32 %v81, %v208
    %v210 = vpop.f32.mrf.mxu0
    %v211 = vadd.f32 %v81, %v210
    %212 = vmatmul.bf16.gmra.mxu0 %v120
    %v213 = vpop.f32.mrf.mxu0
    %v214 = vadd.f32 %v81, %v213
    %v215 = vpop.f32.mrf.mxu0
    %v216 = vadd.f32 %v81, %v215
    %217 = vmatmul.bf16.gmra.mxu0 %v121
    %v218 = vpop.f32.mrf.mxu0
    %v219 = vadd.f32 %v81, %v218
    %v220 = vpop.f32.mrf.mxu0
    %v221 = vadd.f32 %v81, %v220
    %222 = vmatmul.bf16.gmra.mxu0 %v122
    %v223 = vpop.f32.mrf.mxu0
    %v224 = vadd.f32 %v81, %v223
    %v225 = vpop.f32.mrf.mxu0
    %v226 = vadd.f32 %v81, %v225
    %227 = vdwg.mxu0
    %v228 = vmax.f32 %v189, 0.0
    %v229 = vmax.f32 %v191, 0.0
    %v230 = vmax.f32 %v194, 0.0
    %v231 = vmax.f32 %v196, 0.0
    %v232 = vmax.f32 %v199, 0.0
    %v233 = vmax.f32 %v201, 0.0
    %v234 = vmax.f32 %v204, 0.0
    %v235 = vmax.f32 %v206, 0.0
    %v236 = vmax.f32 %v209, 0.0
    %v237 = vmax.f32 %v211, 0.0
    %v238 = vmax.f32 %v214, 0.0
    %v239 = vmax.f32 %v216, 0.0
    %v240 = vmax.f32 %v219, 0.0
    %v241 = vmax.f32 %v221, 0.0
    %v242 = vmax.f32 %v224, 0.0
    %v243 = vmax.f32 %v226, 0.0
    %v244 = vpack.c.bf16 %v228, %v228
    %v245 = vpack.c.bf16 %v229, %v229
    %v246 = vpack.c.bf16 %v230, %v230
    %v247 = vpack.c.bf16 %v231, %v231
    %v248 = vpack.c.bf16 %v232, %v232
    %v249 = vpack.c.bf16 %v233, %v233
    %v250 = vpack.c.bf16 %v234, %v234
    %v251 = vpack.c.bf16 %v235, %v235
    %v252 = vpack.c.bf16 %v236, %v236
    %v253 = vpack.c.bf16 %v237, %v237
    %v254 = vpack.c.bf16 %v238, %v238
    %v255 = vpack.c.bf16 %v239, %v239
    %v256 = vpack.c.bf16 %v240, %v240
    %v257 = vpack.c.bf16 %v241, %v241
    %v258 = vpack.c.bf16 %v242, %v242
    %v259 = vpack.c.bf16 %v243, %v243
    %260 = vst [vmem:[#allocation7] sm:$0xf] %v244
    %261 = vst [vmem:[#allocation7 + $0x4] sm:$0xf] %v245
    %262 = vst [vmem:[#allocation7 + $0x8] sm:$0xf] %v246
    %263 = vst [vmem:[#allocation7 + $0xc] sm:$0xf] %v247
    %264 = vst [vmem:[#allocation7 + $0x10] sm:$0xf] %v248
    %265 = vst [vmem:[#allocation7 + $0x14] sm:$0xf] %v249
    %266 = vst [vmem:[#allocation7 + $0x18] sm:$0xf] %v250
    %267 = vst [vmem:[#allocation7 + $0x1c] sm:$0xf] %v251
    %268 = vst [vmem:[#allocation7 + $0x20] sm:$0xf] %v252
    %269 = vst [vmem:[#allocation7 + $0x24] sm:$0xf] %v253
    %270 = vst [vmem:[#allocation7 + $0x28] sm:$0xf] %v254
    %271 = vst [vmem:[#allocation7 + $0x2c] sm:$0xf] %v255
    %272 = vst [vmem:[#allocation7 + $0x30] sm:$0xf] %v256
    %273 = vst [vmem:[#allocation7 + $0x34] sm:$0xf] %v257
    %274 = vst [vmem:[#allocation7 + $0x38] sm:$0xf] %v258
    %275 = vst [vmem:[#allocation7 + $0x3c] sm:$0xf] %v259
    // Predicated region
    $region22: #{tpu_custom_call.1} parent=1 // pred_check
      _
    $region23: #{tpu_custom_call.1} parent=1 // pred_check_branch
      %277 = sbr.rel (0) target = $region25
    $region24: #{tpu_custom_call.1} parent=1 // pred_region
      %279 = vsyncadd [#allocation4], 0
      %s280 = sshll.u32 [#allocation7], 4
      %s281 = int_to_ptr.vmem [resolvable:$true] %s280
      %s282 = sshll.u32 %s3, 4
      %s283 = int_to_ptr.hbm [resolvable:$true] %s282
      %288 = dma.vmem_to_hbm [thread:$0]  %s281, 1024, %s283, [#allocation4], 64, 64, 4
    $region25: #{tpu_custom_call.1} parent=1 // pred_fallthru
      _
    // Predicated region
    $region26: #{tpu_custom_call.1} parent=1 // pred_check
      _
    $region27: #{tpu_custom_call.1} parent=1 // pred_check_branch
      %290 = sbr.rel (0) target = $region29
    $region28: #{tpu_custom_call.1} parent=1 // pred_region
      %292 = dma.done [#allocation4], 1024
    $region29: #{tpu_custom_call.1} parent=1 // pred_fallthru
      _
    %293 = vsyncpa [#allocation3], 1
    %294 = vsyncpa [#allocation6], 1
    %295 = vsyncpa [#allocation4], 1

</llo_original>
